<compile_context>
chip_gen: v5e
topology: v5e:2x2
jax: 0.10.0
libtpu: 0.0.40
codegen_flags: <defaults>
</compile_context>

<pallas_src>
import functools

import jax
import jax.numpy as jnp
from jax.experimental import pallas as pl
from jax.experimental.pallas import tpu as pltpu


_MIB = 1024 * 1024
# Single-pass budget: 2x double-buffered input + 2x output tiles + f32 working
# copy must fit v7x's 64 MiB physical VMEM per TensorCore with headroom.
_FUSED_VMEM_BUDGET = 48 * _MIB


def _vmem_limit(need_bytes):
    """Explicit scoped-VMEM limit: need + margin, clamped to [32, 56] MiB."""
    return int(min(max(need_bytes + 8 * _MIB, 32 * _MIB), 56 * _MIB))


def _dense_groups(hw, c):
    """Lane-densification factor: pack `groups` spatial positions per 128 lanes."""
    if c < 128 and 128 % c == 0 and hw % (128 // c) == 0:
        return 128 // c
    return 1


def _pick_band_rows(rows, lanes, itemsize, target_bytes=4 * _MIB):
    """Largest multiple-of-8 divisor of `rows` whose band tile fits the target."""
    if rows % 8 != 0:
        return rows  # full-extent block still satisfies the (8,128) rule
    limit_rows = max(8, target_bytes // max(1, lanes * itemsize))
    divisors = [r for r in range(8, rows + 1, 8) if rows % r == 0]
    under = [r for r in divisors if r <= limit_rows]
    if under:
        return under[-1]
    return divisors[0] if divisors else rows


# ---------------------------------------------------------------------------
# Kernel 1: fully fused single-pass GRN (one batch element resident in VMEM)
# ---------------------------------------------------------------------------
def _grn_fused_kernel(x_ref, gamma_ref, beta_ref, out_ref, *, groups):
    """x_ref: (1, R, L) with L = C*groups (lane-dense view when C < 128).
    gamma_ref / beta_ref: (1, L), tiled `groups` times along lanes.
    """
    lanes = x_ref.shape[-1]
    c = lanes // groups

    # --- spatial sum of squares, f32 accumulation.  Own expression so the f32
    #     copy of x is not live across the epilogue (lower vreg/VMEM pressure).
    xf = x_ref[0].astype(jnp.float32)                      # (R, L)
    ss = jnp.sum(xf * xf, axis=0, keepdims=True)           # (1, L)

    # Fold the `groups` lane-groups back to true per-channel sums.
    ss_c = ss[:, 0:c]
    for g in range(1, groups):
        ss_c = ss_c + ss[:, g * c:(g + 1) * c]             # (1, C)

    gx = jnp.sqrt(ss_c)                                    # (1, C)
    mu = jnp.mean(gx, axis=-1, keepdims=True)              # (1, 1)
    nx = gx / (mu + 1e-6)                                  # (1, C)
    if groups > 1:
        nx = jnp.concatenate([nx] * groups, axis=-1)       # (1, L)

    # Folded epilogue: y = x * (gamma*Nx + 1) + beta, in the input dtype.
    x = x_ref[0]
    scale = (gamma_ref[...].astype(jnp.float32) * nx + 1.0).astype(x.dtype)
    bias = beta_ref[...].astype(x.dtype)
    out_ref[0] = (x * scale + bias).astype(out_ref.dtype)


# ---------------------------------------------------------------------------
# Kernels 2a/2b: band-tiled two-phase fallback for large H*W
# ---------------------------------------------------------------------------
def _grn_reduce_kernel(x_ref, ss_ref):
    """Accumulate per-lane sum of squares over spatial bands.
    x_ref: (1, band, L); ss_ref: (1, 1, L) f32, resident across the band axis."""
    @pl.when(pl.program_id(1) == 0)
    def _():
        ss_ref[...] = jnp.zeros_like(ss_ref)

    xf = x_ref[0].astype(jnp.float32)                      # (band, L)
    ss_ref[0] += jnp.sum(xf * xf, axis=0, keepdims=True)   # (1, L)


def _grn_apply_kernel(x_ref, scale_ref, beta_ref, out_ref):
    """y = x * scale + beta on one spatial band."""
    x = x_ref[0]                                           # (band, L)
    s = scale_ref[0].astype(x.dtype)                       # (1, L)
    b = beta_ref[...].astype(x.dtype)                      # (1, L)
    out_ref[0] = (x * s + b).astype(out_ref.dtype)


# ---------------------------------------------------------------------------
# Wrapper
# ---------------------------------------------------------------------------
@functools.partial(jax.jit, static_argnames=("force_banded", "band_rows"))
def grn_forward(x_nhwc, gamma, beta, *, force_banded=False, band_rows=None):
    """GRN forward.  x_nhwc: (N, H, W, C); gamma/beta: (1, C) or (C,)."""
    n, h, w, c = x_nhwc.shape
    hw = h * w
    groups = _dense_groups(hw, c)
    lanes = c * groups
    rows = hw // groups
    itemsize = jnp.dtype(x_nhwc.dtype).itemsize

    x2 = x_nhwc.reshape(n, rows, lanes)                    # free contiguous reshape
    gamma_t = jnp.tile(gamma.reshape(1, c), (1, groups))   # (1, L)
    beta_t = jnp.tile(beta.reshape(1, c), (1, groups))     # (1, L)

    tile_bytes = rows * lanes * itemsize
    fused_need = 4 * tile_bytes + rows * lanes * 4 + 1 * _MIB
    use_banded = force_banded or fused_need > _FUSED_VMEM_BUDGET

    if not use_banded:
        out = pl.pallas_call(
            functools.partial(_grn_fused_kernel, groups=groups),
            out_shape=jax.ShapeDtypeStruct((n, rows, lanes), x_nhwc.dtype),
            grid_spec=pltpu.PrefetchScalarGridSpec(
                num_scalar_prefetch=0,
                grid=(n,),
                in_specs=[
                    pl.BlockSpec((1, rows, lanes), lambda i: (i, 0, 0)),
                    pl.BlockSpec((1, lanes), lambda i: (0, 0)),
                    pl.BlockSpec((1, lanes), lambda i: (0, 0)),
                ],
                out_specs=pl.BlockSpec((1, rows, lanes), lambda i: (i, 0, 0)),
            ),
            compiler_params=pltpu.CompilerParams(
                dimension_semantics=("parallel",),
                vmem_limit_bytes=_vmem_limit(fused_need),
            ),
        )(x2, gamma_t, beta_t)
        return out.reshape(n, h, w, c)

    # ---------------- band-tiled two-phase path (x streamed twice) ----------
    br = band_rows if band_rows is not None else _pick_band_rows(rows, lanes, itemsize)
    assert rows % br == 0 and (br % 8 == 0 or br == rows), "bad band_rows"
    n_bands = rows // br
    band_need = 4 * br * lanes * itemsize + br * lanes * 4 + 1 * _MIB

    # Phase 1: per-batch, per-lane sum of squares (f32 accumulator output).
    ss = pl.pallas_call(
        _grn_reduce_kernel,
        out_shape=jax.ShapeDtypeStruct((n, 1, lanes), jnp.float32),
        grid_spec=pltpu.PrefetchScalarGridSpec(
            num_scalar_prefetch=0,
            grid=(n, n_bands),
            in_specs=[pl.BlockSpec((1, br, lanes), lambda i, b: (i, b, 0))],
            out_specs=pl.BlockSpec((1, 1, lanes), lambda i, b: (i, 0, 0)),
        ),
        compiler_params=pltpu.CompilerParams(
            dimension_semantics=("parallel", "arbitrary"),
            vmem_limit_bytes=_vmem_limit(band_need),
        ),
    )(x2)

    # Tiny per-(N, C) stat math (negligible, plain XLA): fold groups, Gx, Nx, scale.
    ss_c = ss.reshape(n, groups, c).sum(axis=1)            # (N, C)
    gx = jnp.sqrt(ss_c)
    nx = gx / (jnp.mean(gx, axis=-1, keepdims=True) + 1e-6)
    scale_c = gamma.reshape(1, c).astype(jnp.float32) * nx + 1.0
    scale = jnp.tile(scale_c, (1, groups)).reshape(n, 1, lanes)

    # Phase 2: y = x * scale + beta, band-tiled elementwise map.
    out = pl.pallas_call(
        _grn_apply_kernel,
        out_shape=jax.ShapeDtypeStruct((n, rows, lanes), x_nhwc.dtype),
        grid_spec=pltpu.PrefetchScalarGridSpec(
            num_scalar_prefetch=0,
            grid=(n, n_bands),
            in_specs=[
                pl.BlockSpec((1, br, lanes), lambda i, b: (i, b, 0)),
                pl.BlockSpec((1, 1, lanes), lambda i, b: (i, 0, 0)),
                pl.BlockSpec((1, lanes), lambda i, b: (0, 0)),
            ],
            out_specs=pl.BlockSpec((1, br, lanes), lambda i, b: (i, b, 0)),
        ),
        compiler_params=pltpu.CompilerParams(
            dimension_semantics=("parallel", "parallel"),
            vmem_limit_bytes=_vmem_limit(band_need),
        ),
    )(x2, scale, beta_t)
    return out.reshape(n, h, w, c)


# ---------------------------------------------------------------------------
# Pure-JAX reference (mirrors the PyTorch module)
# ---------------------------------------------------------------------------
def _reference_grn(x, gamma, beta):
    gx = jnp.sqrt(jnp.sum(jnp.square(x), axis=(1, 2), keepdims=True))   # (N,1,1,C)
    nx = gx / (jnp.mean(gx, axis=-1, keepdims=True) + 1e-6)
    return gamma.reshape(1, 1, 1, -1) * (x * nx) + beta.reshape(1, 1, 1, -1) + x


# ---------------------------------------------------------------------------
# Main
# ---------------------------------------------------------------------------
if __name__ == "__main__":
    key = jax.random.PRNGKey(0)

    def _check(nhwc_shape, *, force_banded=False, band_rows=None, tag=""):
        nloc, hloc, wloc, cloc = nhwc_shape
        kx, kg, kb = jax.random.split(jax.random.fold_in(key, hash(tag) % 1000), 3)
        x = jax.random.normal(kx, nhwc_shape, jnp.float32)
        # PyTorch initializes gamma/beta to zeros (identity); use random values
        # so the check is non-trivial.
        gamma = 0.5 * jax.random.normal(kg, (1, cloc), jnp.float32)
        beta = 0.5 * jax.random.normal(kb, (1, cloc), jnp.float32)

        out = jax.block_until_ready(
            grn_forward(x, gamma, beta, force_banded=force_banded, band_rows=band_rows))
        ref = jax.block_until_ready(_reference_grn(x, gamma, beta))

        assert out.shape == nhwc_shape
        assert jnp.allclose(out, ref, atol=1e-4, rtol=1e-4), f"mismatch ({tag})"

    # 1) fused single-pass path, lane-dense view (C=32 -> groups=4).
    _check((2, 16, 16, 32), tag="fused_dense")
    # 2) band-tiled two-phase fallback, forced at small shape to exercise it.
    _check((2, 16, 16, 32), force_banded=True, band_rows=16, tag="banded")
    # 3) fused path with C already a multiple of 128 (groups=1).
    _check((2, 8, 8, 128), tag="fused_c128")

    print("KERNEL_OK")
</pallas_src>

<mosaic_0001>
module attributes {stable_mosaic.version = 11 : i64} {
  func.func @_grn_fused_kernel(%arg0: i32, %arg1: memref<1x64x128xf32, #tpu.memory_space<vmem>>, %arg2: memref<1x128xf32, #tpu.memory_space<vmem>>, %arg3: memref<1x128xf32, #tpu.memory_space<vmem>>, %arg4: memref<1x64x128xf32, #tpu.memory_space<vmem>>) attributes {dimension_semantics = [#tpu.dimension_semantics<parallel>], iteration_bounds = array<i64: 2>, scalar_prefetch = 0 : i64, scratch_operands = 0 : i64, tpu.core_type = #tpu.core_type<tc>, window_params = [{transform_indices = @transform_0, window_bounds = array<i64: 1, 64, 128>}, {pipeline_mode = #tpu.pipeline_mode<synchronous>, transform_indices = @transform_1, window_bounds = array<i64: 1, 128>}, {pipeline_mode = #tpu.pipeline_mode<synchronous>, transform_indices = @transform_2, window_bounds = array<i64: 1, 128>}, {transform_indices = @transform_3, window_bounds = array<i64: 1, 64, 128>}]} {
    %c0 = arith.constant 0 : index
    %c0_0 = arith.constant 0 : index
    %c0_1 = arith.constant 0 : index
    %0 = vector.load %arg1[%c0, %c0_0, %c0_1] : memref<1x64x128xf32, #tpu.memory_space<vmem>>, vector<1x64x128xf32>
    %1 = vector.shape_cast %0 : vector<1x64x128xf32> to vector<64x128xf32>
    %2 = arith.mulf %1, %1 : vector<64x128xf32>
    %cst = arith.constant dense<0.000000e+00> : vector<128xf32>
    %3 = vector.multi_reduction <add>, %2, %cst [0] : vector<64x128xf32> to vector<128xf32>
    %4 = vector.shape_cast %3 : vector<128xf32> to vector<1x128xf32>
    %5 = vector.extract_strided_slice %4 {offsets = [0, 0], sizes = [1, 32], strides = [1, 1]} : vector<1x128xf32> to vector<1x32xf32>
    %6 = vector.extract_strided_slice %4 {offsets = [0, 32], sizes = [1, 32], strides = [1, 1]} : vector<1x128xf32> to vector<1x32xf32>
    %7 = arith.addf %5, %6 : vector<1x32xf32>
    %8 = vector.extract_strided_slice %4 {offsets = [0, 64], sizes = [1, 32], strides = [1, 1]} : vector<1x128xf32> to vector<1x32xf32>
    %9 = arith.addf %7, %8 : vector<1x32xf32>
    %10 = vector.extract_strided_slice %4 {offsets = [0, 96], sizes = [1, 32], strides = [1, 1]} : vector<1x128xf32> to vector<1x32xf32>
    %11 = arith.addf %9, %10 : vector<1x32xf32>
    %12 = math.sqrt %11 : vector<1x32xf32>
    %cst_2 = arith.constant dense<0.000000e+00> : vector<1xf32>
    %13 = vector.multi_reduction <add>, %12, %cst_2 [1] : vector<1x32xf32> to vector<1xf32>
    %14 = vector.shape_cast %13 : vector<1xf32> to vector<1x1xf32>
    %cst_3 = arith.constant 3.200000e+01 : f32
    %15 = vector.broadcast %cst_3 : f32 to vector<1x1xf32>
    %16 = arith.divf %14, %15 : vector<1x1xf32>
    %cst_4 = arith.constant 9.99999997E-7 : f32
    %17 = vector.broadcast %cst_4 : f32 to vector<1x1xf32>
    %18 = arith.addf %16, %17 : vector<1x1xf32>
    %19 = vector.broadcast %18 : vector<1x1xf32> to vector<1x32xf32>
    %20 = arith.divf %12, %19 : vector<1x32xf32>
    %21 = tpu.concatenate %20, %20, %20, %20 in 1 : vector<1x32xf32>, vector<1x32xf32>, vector<1x32xf32>, vector<1x32xf32> -> vector<1x128xf32>
    %c0_5 = arith.constant 0 : index
    %c0_6 = arith.constant 0 : index
    %c0_7 = arith.constant 0 : index
    %22 = vector.load %arg1[%c0_5, %c0_6, %c0_7] : memref<1x64x128xf32, #tpu.memory_space<vmem>>, vector<1x64x128xf32>
    %23 = vector.shape_cast %22 : vector<1x64x128xf32> to vector<64x128xf32>
    %c0_8 = arith.constant 0 : index
    %c0_9 = arith.constant 0 : index
    %24 = vector.load %arg2[%c0_8, %c0_9] : memref<1x128xf32, #tpu.memory_space<vmem>>, vector<1x128xf32>
    %25 = arith.mulf %24, %21 : vector<1x128xf32>
    %cst_10 = arith.constant 1.000000e+00 : f32
    %26 = vector.broadcast %cst_10 : f32 to vector<1x128xf32>
    %27 = arith.addf %25, %26 : vector<1x128xf32>
    %c0_11 = arith.constant 0 : index
    %c0_12 = arith.constant 0 : index
    %28 = vector.load %arg3[%c0_11, %c0_12] : memref<1x128xf32, #tpu.memory_space<vmem>>, vector<1x128xf32>
    %29 = vector.broadcast %27 : vector<1x128xf32> to vector<64x128xf32>
    %30 = arith.mulf %23, %29 : vector<64x128xf32>
    %31 = vector.broadcast %28 : vector<1x128xf32> to vector<64x128xf32>
    %32 = arith.addf %30, %31 : vector<64x128xf32>
    %c0_13 = arith.constant 0 : index
    %c0_14 = arith.constant 0 : index
    %c0_15 = arith.constant 0 : index
    %33 = vector.load %arg4[%c0_13, %c0_14, %c0_15] : memref<1x64x128xf32, #tpu.memory_space<vmem>>, vector<1x64x128xf32>
    %34 = vector.shape_cast %33 : vector<1x64x128xf32> to vector<64x128xf32>
    %35 = vector.shape_cast %32 : vector<64x128xf32> to vector<1x64x128xf32>
    tpu.vector_store %arg4[%c0_13, %c0_14, %c0_15], %35 {strides = array<i32>} : memref<1x64x128xf32, #tpu.memory_space<vmem>>, vector<1x64x128xf32>,
    return
  }
  func.func @transform_0(%arg0: i32) -> (i32, i32, i32) {
    %c0_i32 = arith.constant 0 : i32
    %c0_i32_0 = arith.constant 0 : i32
    %c0_i32_1 = arith.constant 0 : i32
    return %arg0, %c0_i32, %c0_i32_0 : i32, i32, i32
  }
  func.func @transform_1(%arg0: i32) -> (i32, i32) {
    %c0_i32 = arith.constant 0 : i32
    %c0_i32_0 = arith.constant 0 : i32
    %c0_i32_1 = arith.constant 0 : i32
    return %c0_i32, %c0_i32_0 : i32, i32
  }
  func.func @transform_2(%arg0: i32) -> (i32, i32) {
    %c0_i32 = arith.constant 0 : i32
    %c0_i32_0 = arith.constant 0 : i32
    %c0_i32_1 = arith.constant 0 : i32
    return %c0_i32, %c0_i32_0 : i32, i32
  }
  func.func @transform_3(%arg0: i32) -> (i32, i32, i32) {
    %c0_i32 = arith.constant 0 : i32
    %c0_i32_0 = arith.constant 0 : i32
    %c0_i32_1 = arith.constant 0 : i32
    return %arg0, %c0_i32, %c0_i32_0 : i32, i32, i32
  }
}

</mosaic_0001>

<llo_original>
// kernel: grn_forward.1
$region0: #{grn_forward.1}
  #allocation0 [shape = 'u32[]', space=smem, size = 0x4, offset = 0x4, fixed_abs, tag = 'smem constant byte address 0x4 - core index']
  #allocation1 [shape = 'u32[72,128]{1,0:T(1,128)}', space=vmem, size = 0x9000, scoped, tag = 'internal scratch']
  %s0 = inlined_call_operand.vmem [shape: f32[2,64,128], index: 0, kind: input, shape index: {}]
  %s1 = inlined_call_operand.vmem [shape: f32[1,128], index: 1, kind: input, shape index: {}]
  %s2 = inlined_call_operand.vmem [shape: f32[1,128], index: 2, kind: input, shape index: {}]
  %s3 = inlined_call_operand.vmem [shape: f32[2,64,128], index: 3, kind: output, shape index: {}]
  %s4 = sld [smem:[#allocation0]]
  $region45: #{grn_forward.1} parent=0
    _
  %s6 = ssub.s32 1, %s4
  %s7 = scalar_select 0, %s6, %s4
  loop: start=0, step=1, limit=4
  $region2: #{grn_forward.1} parent=0 // loop_pre_header
    _
  $region3: #{grn_forward.1} parent=0 // loop_header
    %s9 = sphi 0, %s13
    %p10 = scmp.ge.s32.totalorder %s9, 4
    %s19 = sphi 0, %s21
    %s22 = sphi 0, %s19
    %s23 = sphi 0, %s22
    %s39 = sphi 0, %s23
    %s43 = sphi 0, %s43
    %s45 = sphi 0, %s43
    %s46 = sphi 0, %s45
    %s60 = sphi 0, %s46
    %s64 = sphi 0, %s64
    %s66 = sphi 0, %s64
    %s67 = sphi 0, %s66
    %s81 = sphi 0, %s67
    %s87 = sphi 0, %s89
    %s90 = sphi 0, %s87
    %s91 = sphi 0, %s90
    %s107 = sphi 0, %s91
  $region4: #{grn_forward.1} parent=0 // loop_header_branch
    %12 = sbr.rel (%p10) target = $region8
  $region5: #{grn_forward.1} parent=0 // loop_body
    %s14 = ssub.s32 %s9, 1
    %s15 = ssub.s32 %s9, 2
    %s16 = sadd.s32 %s9, 1
    %s17 = ssub.s32 %s9, %s16
    %p18 = scmp.eq.s32.totalorder %s17, 0
    %s20 = sadd.s32 %s19, 1
    %s21 = scalar_select %p18, %s19, %s20
    %p24 = pneg %p18
    %p25 = scmp.eq.s32.totalorder %s9, 1
    %p26 = por %p24, %p25
    %p27 = scmp.ne.s32.totalorder %s19, %s22
    %p28 = scmp.eq.s32.totalorder %s9, 0
    %p29 = por %p27, %p28
    %p30 = scmp.ne.s32.totalorder %s19, %s22
    %p31 = scmp.eq.s32.totalorder %s14, 1
    %p32 = por %p30, %p31
    %p33 = scmp.ne.s32.totalorder %s22, %s23
    %p34 = scmp.eq.s32.totalorder %s14, 0
    %p35 = por %p33, %p34
    %p36 = scmp.ne.s32.totalorder %s22, %s23
    %p37 = scmp.eq.s32.totalorder %s15, 1
    %p38 = por %p36, %p37
    %p40 = scmp.ne.s32.totalorder %s23, %s39
    %p41 = scmp.eq.s32.totalorder %s15, 0
    %p42 = por %p40, %p41
    %s44 = sadd.s32 %s43, 1
    %p47 = scmp.eq.s32.totalorder %s9, 1
    %p48 = scmp.ne.s32.totalorder %s43, %s45
    %p49 = scmp.eq.s32.totalorder %s9, 0
    %p50 = por %p48, %p49
    %p51 = scmp.ne.s32.totalorder %s43, %s45
    %p52 = scmp.eq.s32.totalorder %s14, 1
    %p53 = por %p51, %p52
    %p54 = scmp.ne.s32.totalorder %s45, %s46
    %p55 = scmp.eq.s32.totalorder %s14, 0
    %p56 = por %p54, %p55
    %p57 = scmp.ne.s32.totalorder %s45, %s46
    %p58 = scmp.eq.s32.totalorder %s15, 1
    %p59 = por %p57, %p58
    %p61 = scmp.ne.s32.totalorder %s46, %s60
    %p62 = scmp.eq.s32.totalorder %s15, 0
    %p63 = por %p61, %p62
    %s65 = sadd.s32 %s64, 1
    %p68 = scmp.eq.s32.totalorder %s9, 1
    %p69 = scmp.ne.s32.totalorder %s64, %s66
    %p70 = scmp.eq.s32.totalorder %s9, 0
    %p71 = por %p69, %p70
    %p72 = scmp.ne.s32.totalorder %s64, %s66
    %p73 = scmp.eq.s32.totalorder %s14, 1
    %p74 = por %p72, %p73
    %p75 = scmp.ne.s32.totalorder %s66, %s67
    %p76 = scmp.eq.s32.totalorder %s14, 0
    %p77 = por %p75, %p76
    %p78 = scmp.ne.s32.totalorder %s66, %s67
    %p79 = scmp.eq.s32.totalorder %s15, 1
    %p80 = por %p78, %p79
    %p82 = scmp.ne.s32.totalorder %s67, %s81
    %p83 = scmp.eq.s32.totalorder %s15, 0
    %p84 = por %p82, %p83
    %s85 = ssub.s32 %s9, %s16
    %p86 = scmp.eq.s32.totalorder %s85, 0
    %s88 = sadd.s32 %s87, 1
    %s89 = scalar_select %p86, %s87, %s88
    %p92 = pneg %p86
    %p93 = scmp.eq.s32.totalorder %s9, 1
    %p94 = por %p92, %p93
    %p95 = scmp.ne.s32.totalorder %s87, %s90
    %p96 = scmp.eq.s32.totalorder %s9, 0
    %p97 = por %p95, %p96
    %p98 = scmp.ne.s32.totalorder %s87, %s90
    %p99 = scmp.eq.s32.totalorder %s14, 1
    %p100 = por %p98, %p99
    %p101 = scmp.ne.s32.totalorder %s90, %s91
    %p102 = scmp.eq.s32.totalorder %s14, 0
    %p103 = por %p101, %p102
    %p104 = scmp.ne.s32.totalorder %s90, %s91
    %p105 = scmp.eq.s32.totalorder %s15, 1
    %p106 = por %p104, %p105
    %p108 = scmp.ne.s32.totalorder %s91, %s107
    %p109 = scmp.eq.s32.totalorder %s15, 0
    %p110 = por %p108, %p109
    %p111 = scmp.le.s32.totalorder 1, %s9
    %p112 = scmp.lt.s32.totalorder %s9, 3
    %p113 = pnand %p111, %p112
    %p114 = pneg %p113
    // Predicated region
    $region9: #{grn_forward.1} parent=5 // pred_check
      _
    $region10: #{grn_forward.1} parent=5 // pred_check_branch
      %116 = sbr.rel (%p113) target = $region12
    $region11: #{grn_forward.1} parent=5 // pred_region
      %s117 = ssub.s32 %s9, 1
      // Predicated region
      $region13: #{grn_forward.1} parent=11 // pred_check
        %p118 = pneg %p56
      $region14: #{grn_forward.1} parent=11 // pred_check_branch
        %120 = sbr.rel (%p118) target = $region16
      $region15: #{grn_forward.1} parent=11 // pred_region
        _
      $region16: #{grn_forward.1} parent=11 // pred_fallthru
        _
      // Predicated region
      $region17: #{grn_forward.1} parent=11 // pred_check
        %p121 = pneg %p77
      $region18: #{grn_forward.1} parent=11 // pred_check_branch
        %123 = sbr.rel (%p121) target = $region20
      $region19: #{grn_forward.1} parent=11 // pred_region
        _
      $region20: #{grn_forward.1} parent=11 // pred_fallthru
        _
    $region12: #{grn_forward.1} parent=5 // pred_fallthru
      _
    %p124 = scmp.lt.s32.totalorder %s9, 2
    // Predicated region
    $region21: #{grn_forward.1} parent=5 // pred_check
      %p125 = pneg %p124
    $region22: #{grn_forward.1} parent=5 // pred_check_branch
      %127 = sbr.rel (%p125) target = $region24
    $region23: #{grn_forward.1} parent=5 // pred_region
      // Predicated region
      $region25: #{grn_forward.1} parent=23 // pred_check
        %p128 = pneg %p29
      $region26: #{grn_forward.1} parent=23 // pred_check_branch
        %130 = sbr.rel (%p128) target = $region28
      $region27: #{grn_forward.1} parent=23 // pred_region
        %p131 = scmp.lt.s32.totalorder %s9, 1
        %s132 = scalar_select %p131, %s9, 1
        %s133 = smul.addr %s132, 8
        %s134 = smul.addr %s133, 8
        %s135 = scalar_lea.vmem %s0, %s134
      $region28: #{grn_forward.1} parent=23 // pred_fallthru
        _
    $region24: #{grn_forward.1} parent=5 // pred_fallthru
      _
    %p136 = scmp.le.s32.totalorder 1, %s9
    %p137 = scmp.lt.s32.totalorder %s9, 3
    %p138 = pnand %p136, %p137
    %p139 = pneg %p138
    // Predicated region
    $region29: #{grn_forward.1} parent=5 // pred_check
      _
    $region30: #{grn_forward.1} parent=5 // pred_check_branch
      %141 = sbr.rel (%p138) target = $region32
    $region31: #{grn_forward.1} parent=5 // pred_region
      %s142 = ssub.s32 %s9, 1
      %p143 = scmp.lt.s32.totalorder %s14, 1
      %s144 = scalar_select %p143, %s14, 1
      %s145 = smul.addr %s144, 8
      %s146 = smul.addr %s145, 8
      %s147 = scalar_lea.vmem %s0, %s146
      %p148 = pneg %p35
      %p149 = pneg %p32
      %p150 = pneg %p56
      %p151 = pneg %p53
      %p152 = pneg %p77
      %p153 = pneg %p74
      %p154 = pneg %p103
      %p155 = pneg %p100
      %p156 = scmp.lt.s32.totalorder %s14, 1
      %s157 = scalar_select %p156, %s14, 1
      %s158 = smul.addr %s157, 8
      %s159 = smul.addr %s158, 8
      %s160 = scalar_lea.vmem %s3, %s159
      %p161 = scmp.lt.s32.totalorder %s14, 1
      %s162 = scalar_select %p161, %s14, 1
      %s163 = smul.addr %s162, 8
      %s164 = smul.addr %s163, 8
      %s165 = scalar_lea.vmem %s0, %s164
      %p166 = scmp.lt.s32.totalorder %s14, 1
      %s167 = scalar_select %p166, %s14, 1
      %s168 = smul.addr %s167, 8
      %s169 = smul.addr %s168, 8
      %s170 = scalar_lea.vmem %s3, %s169
      %v171 = vld [vmem:[%s165] sm:$0xff]
      %v172 = vld [vmem:[%s165 + $0x8] sm:$0xff]
      %v173 = vld [vmem:[%s165 + $0x10] sm:$0xff]
      %v174 = vld [vmem:[%s165 + $0x18] sm:$0xff]
      %v175 = vld [vmem:[%s165 + $0x20] sm:$0xff]
      %v176 = vld [vmem:[%s165 + $0x28] sm:$0xff]
      %v177 = vld [vmem:[%s165 + $0x30] sm:$0xff]
      %v178 = vld [vmem:[%s165 + $0x38] sm:$0xff]
      %v179 = vmul.f32 %v171, %v171
      %v180 = vmul.f32 %v172, %v172
      %v181 = vmul.f32 %v173, %v173
      %v182 = vmul.f32 %v174, %v174
      %v183 = vmul.f32 %v175, %v175
      %v184 = vmul.f32 %v176, %v176
      %v185 = vmul.f32 %v177, %v177
      %v186 = vmul.f32 %v178, %v178
      %v187 = vadd.f32 %v179, %v180
      %v188 = vadd.f32 %v187, %v181
      %v189 = vadd.f32 %v188, %v182
      %v190 = vadd.f32 %v189, %v183
      %v191 = vadd.f32 %v190, %v184
      %v192 = vadd.f32 %v191, %v185
      %v193 = vadd.f32 %v192, %v186
      %v194 = vrot.slane %v193, 4
      %v195 = vadd.f32 %v193, %v194
      %v196 = vrot.slane %v195, 2
      %v197 = vadd.f32 %v195, %v196
      %v198 = vrot.slane %v197, 1
      %v199 = vadd.f32 %v197, %v198
      %201 = vrot.lane.b32.xlu0 %v199, 96
      %v202 = vpop.permute.xlu0 %201
      %v204 = vadd.f32 %v199, %v202
      %205 = vrot.lane.b32.xlu0 %v199, 64
      %v206 = vpop.permute.xlu0 %205
      %v208 = vadd.f32 %v204, %v206
      %209 = vrot.lane.b32.xlu0 %v199, 32
      %v210 = vpop.permute.xlu0 %209
      %v212 = vadd.f32 %v208, %v210
      %v213 = vrsqrt.pop %v212
      %v214 = vmul.f32 %v213, %v212
      %v215 = vmul.f32 %v214, %v213
      %v216 = vmul.f32 0.5, %v215
      %v217 = vsub.f32 1.5, %v216
      %v218 = vmul.f32 %v213, %v217
      %v219 = vmul.f32 %v212, %v218
      %vm220 = vcmp.eq.f32.partialorder %v212, inf
      %v221 = vsel %vm220, %v212, %v219
      %vm222 = vcmp.eq.f32.partialorder %v212, 0.0
      %v223 = vand.u32 %v212, 2147483648
      %v224 = vsel %vm222, %v223, %v221
      %vm225 = vcmask 253952
      %v226 = vsel %vm225, %v224, 0.0
      %227 = vadd.xlane.f32.xlu0 %v226
      %v228 = vpop.xlane.xlu0 %227
      %v229 = vrcp.pop 32.0
      %v230 = vmul.f32 32.0, %v229
      %v231 = vsub.f32 1.0, %v230
      %v232 = vmul.f32 %v229, %v231
      %v233 = vadd.f32 %v229, %v232
      %vm234 = vweird.f32 %v229
      %v235 = vsel %vm234, %v229, %v233
      %v236 = vmul.f32 %v228, %v235
      %v237 = vadd.f32 %v236, 1e-06
      %v238 = vrcp.pop %v237
      %v239 = vmul.f32 %v237, %v238
      %v240 = vsub.f32 1.0, %v239
      %v241 = vmul.f32 %v238, %v240
      %v242 = vadd.f32 %v238, %v241
      %vm243 = vweird.f32 %v237
      %vm244 = vweird.f32 %v238
      %vm245 = vmor %vm243, %vm244
      %v246 = vsel %vm245, %v238, %v242
      %v247 = vand.u32 2147483647, %v237
      %vm248 = vcmp.eq.f32.partialorder %v247, 8.507059e+37
      %v249 = vand.u32 %v237, 2147483648
      %v250 = vor.u32 1.1754944e-38, %v249
      %v251 = vsel %vm248, %v250, %v246
      %v252 = vmul.f32 %v224, %v251
      %254 = vrot.lane.b32.xlu0 %v252, 32
      %v255 = vpop.permute.xlu0 %254
      %257 = vrot.lane.b32.xlu0 %v252, 64
      %v258 = vpop.permute.xlu0 %257
      %260 = vrot.lane.b32.xlu0 %v252, 96
      %v261 = vpop.permute.xlu0 %260
      %vm263 = vcmask 261120
      %v264 = vsel %vm263, %v252, %v255
      %vm265 = vcmask 523264
      %v266 = vsel %vm265, %v264, %v258
      %vm267 = vcmask 785408
      %v268 = vsel %vm267, %v266, %v261
      %v269 = vld [vmem:[%s1] sm:$0x1]
      %v270 = vmul.f32 %v269, %v268
      %v271 = vadd.f32 %v270, 1.0
      %v272 = vld [vmem:[%s2] sm:$0x1]
      %v274 = vperm.slane %v271, 0
      %v276 = vmul.f32 %v171, %v274
      %v277 = vmul.f32 %v172, %v274
      %v278 = vmul.f32 %v173, %v274
      %v279 = vmul.f32 %v174, %v274
      %v280 = vmul.f32 %v175, %v274
      %v281 = vmul.f32 %v176, %v274
      %v282 = vmul.f32 %v177, %v274
      %v283 = vmul.f32 %v178, %v274
      %v285 = vperm.slane %v272, 0
      %v287 = vadd.f32 %v276, %v285
      %v288 = vadd.f32 %v277, %v285
      %v289 = vadd.f32 %v278, %v285
      %v290 = vadd.f32 %v279, %v285
      %v291 = vadd.f32 %v280, %v285
      %v292 = vadd.f32 %v281, %v285
      %v293 = vadd.f32 %v282, %v285
      %v294 = vadd.f32 %v283, %v285
      %295 = vst [vmem:[%s170] sm:$0xff] %v287
      %296 = vst [vmem:[%s170 + $0x8] sm:$0xff] %v288
      %297 = vst [vmem:[%s170 + $0x10] sm:$0xff] %v289
      %298 = vst [vmem:[%s170 + $0x18] sm:$0xff] %v290
      %299 = vst [vmem:[%s170 + $0x20] sm:$0xff] %v291
      %300 = vst [vmem:[%s170 + $0x28] sm:$0xff] %v292
      %301 = vst [vmem:[%s170 + $0x30] sm:$0xff] %v293
      %302 = vst [vmem:[%s170 + $0x38] sm:$0xff] %v294
      %p303 = scmp.lt.s32.totalorder %s14, 1
      %s304 = scalar_select %p303, %s14, 1
      %s305 = smul.addr %s304, 8
      %s306 = smul.addr %s305, 8
      %s307 = scalar_lea.vmem %s3, %s306
      // Predicated region
      $region33: #{grn_forward.1} parent=31 // pred_check
        %p308 = pneg %p100
      $region34: #{grn_forward.1} parent=31 // pred_check_branch
        %310 = sbr.rel (%p308) target = $region36
      $region35: #{grn_forward.1} parent=31 // pred_region
        _
      $region36: #{grn_forward.1} parent=31 // pred_fallthru
        _
    $region32: #{grn_forward.1} parent=5 // pred_fallthru
      _
    %p311 = scmp.le.s32.totalorder 2, %s9
    // Predicated region
    $region37: #{grn_forward.1} parent=5 // pred_check
      %p312 = pneg %p311
    $region38: #{grn_forward.1} parent=5 // pred_check_branch
      %314 = sbr.rel (%p312) target = $region40
    $region39: #{grn_forward.1} parent=5 // pred_region
      %s315 = ssub.s32 %s9, 2
      // Predicated region
      $region41: #{grn_forward.1} parent=39 // pred_check
        %p316 = pneg %p106
      $region42: #{grn_forward.1} parent=39 // pred_check_branch
        %318 = sbr.rel (%p316) target = $region44
      $region43: #{grn_forward.1} parent=39 // pred_region
        %p319 = scmp.lt.s32.totalorder %s15, 1
        %s320 = scalar_select %p319, %s15, 1
        %s321 = smul.addr %s320, 8
        %s322 = smul.addr %s321, 8
        %s323 = scalar_lea.vmem %s3, %s322
      $region44: #{grn_forward.1} parent=39 // pred_fallthru
        _
    $region40: #{grn_forward.1} parent=5 // pred_fallthru
      _
  $region6: #{grn_forward.1} parent=0 // loop_footer
    %s13 = sadd.s32 1, %s9
  $region7: #{grn_forward.1} parent=0 // loop_footer_branch
    %8 = sbr.rel target = $region3
  $region8: #{grn_forward.1} parent=0 // loop_exit
    _

</llo_original>
